<compile_context>
chip_gen: v5e
topology: v5e:2x2
jax: 0.10.0
libtpu: 0.0.40
codegen_flags: <defaults>
</compile_context>

<pallas_src>
import functools

import jax
import jax.numpy as jnp
from jax import lax
from jax.experimental import pallas as pl
from jax.experimental.pallas import tpu as pltpu

SMOOTH = 1e-05
POS_WEIGHT = 0.225
LANE = 128
SUBLANE = 8


def _round_up(x, m):
    return ((x + m - 1) // m) * m


def _sublane_multiple(dtype):
    """Minimum legal second-minor block multiple for a dtype (8/16/32)."""
    return SUBLANE * max(1, 4 // jnp.dtype(dtype).itemsize)


def _tensorcores_per_device():
    """Best-effort TC-per-device count; conservative fallback of 1 (v5e/v6e)."""
    try:
        info = pltpu.get_tpu_info()
    except Exception:
        return 1
    for name in ("num_cores", "core_count", "num_tensorcores",
                 "tensorcore_count", "cores_per_chip"):
        v = getattr(info, name, None)
        if isinstance(v, int) and v >= 1:
            return v
    return 1


def _loss_kernel(x_ref, y_ref, acc_ref, *, pos_weight, tm, n_total,
                 blocks_per_core, approx_reciprocal):
    """Accumulate per-tile partial sums of (bce, pred*y, pred, y).

    x_ref/y_ref: (tm, 128) tiles of logits / targets (any float dtype).
    acc_ref:     (1, 4, 8, 128) per-core output block, resident across the inner
                 (arbitrary) grid axis and used as the accumulator.
    """
    c = pl.program_id(0)
    i = pl.program_id(1)

    @pl.when(i == 0)
    def _():
        acc_ref[...] = jnp.zeros_like(acc_ref)

    x = x_ref[...].astype(jnp.float32)
    y = y_ref[...].astype(jnp.float32)

    # One transcendental per element: e = exp(-|x|) feeds both the numerically
    # stable softplus(-x) and the numerically stable sigmoid(x).
    e = jnp.exp(-jnp.abs(x))
    sp_neg_x = jnp.maximum(-x, 0.0) + jnp.log1p(e)            # softplus(-x)
    # BCEWithLogits with pos_weight p:
    #   (1 - y) * x + (1 + (p - 1) * y) * softplus(-x)
    #     == x + softplus(-x) + y * ((p - 1) * softplus(-x) - x)   (fewer VALU ops)
    bce = x + sp_neg_x + y * ((pos_weight - 1.0) * sp_neg_x - x)

    one_plus_e = 1.0 + e
    if approx_reciprocal:
        inv_1pe = pl.reciprocal(one_plus_e, approx=True)       # EUP rcp, no refine
    else:
        inv_1pe = 1.0 / one_plus_e
    pred = jnp.where(x >= 0.0, inv_1pe, e * inv_1pe)           # sigmoid(x)
    py = pred * y

    def accumulate(bce_v, py_v, pred_v, y_v):
        def fold(v):
            # (tm, 128) -> (8, 128): sum groups of 8 sublanes via plain vreg adds
            # (VPU); the expensive XLU cross-lane reduce stays out of the hot loop.
            return v.reshape(tm // SUBLANE, SUBLANE, LANE).sum(axis=0)
        acc_ref[0, 0] += fold(bce_v)    # sum of per-element BCE terms
        acc_ref[0, 1] += fold(py_v)     # intersection
        acc_ref[0, 2] += fold(pred_v)   # sum of predictions
        acc_ref[0, 3] += fold(y_v)      # sum of targets

    # Ragged-tail handling without wrapper padding: elements whose global linear
    # index is >= n_total (partial last block / lane padding / duplicated clamped
    # blocks) must not contribute.  `rem` is the number of valid elements counted
    # from this tile's first element.
    row_start = (c * blocks_per_core + i) * tm
    rem = n_total - row_start * LANE

    @pl.when(rem >= tm * LANE)
    def _():                                                    # common full tile
        accumulate(bce, py, pred, y)

    @pl.when(rem < tm * LANE)
    def _():                                                    # at most 1 tile/core
        idx = (lax.broadcasted_iota(jnp.int32, (tm, LANE), 0) * LANE
               + lax.broadcasted_iota(jnp.int32, (tm, LANE), 1))
        m = idx < rem
        zero = jnp.zeros((), jnp.float32)
        accumulate(jnp.where(m, bce, zero), jnp.where(m, py, zero),
                   jnp.where(m, pred, zero), jnp.where(m, y, zero))


def bce_plus_dice_loss(output, true_mask, *, pos_weight=POS_WEIGHT, smooth=SMOOTH,
                       tm_max=4096, num_cores=None, approx_reciprocal=False):
    """Scalar loss = BCEWithLogitsLoss(pos_weight)(output, true_mask) + dice_loss."""
    x = output.reshape(-1)
    y = true_mask.reshape(-1)
    n = x.shape[0]

    if num_cores is None:
        num_cores = _tensorcores_per_device()

    sub = max(_sublane_multiple(x.dtype), _sublane_multiple(y.dtype))

    # Lane-dense (rows, 128) view.  Padding (a real copy) only happens when
    # n % 128 != 0 or the input is smaller than one legal block; padded zeros are
    # excluded by the in-kernel mask, so no analytic correction is needed.
    rows = max(pl.cdiv(n, LANE), sub)
    pad = rows * LANE - n
    if pad:
        # TODO(synk): a 1-D manual-DMA path would avoid this copy for n % 128 != 0.
        x = jnp.pad(x, (0, pad))
        y = jnp.pad(y, (0, pad))
    x = x.reshape(rows, LANE)
    y = y.reshape(rows, LANE)

    # Tile height: multiple of the dtype sublane packing, capped at tm_max and at
    # the largest legal height <= rows (the last block may be partial).
    tm_cap = (rows // sub) * sub
    tm = max(sub, min(_round_up(tm_max, sub),
                      _round_up(pl.cdiv(rows, num_cores), sub)))
    tm = min(tm, tm_cap)

    blocks_total = pl.cdiv(rows, tm)
    cores = num_cores if blocks_total >= num_cores else 1
    blocks_per_core = pl.cdiv(blocks_total, cores)

    kernel = functools.partial(
        _loss_kernel, pos_weight=pos_weight, tm=tm, n_total=n,
        blocks_per_core=blocks_per_core, approx_reciprocal=approx_reciprocal)

    # Clamp the global block index so the (rare) surplus blocks of the last core
    # never request an out-of-range block; their contribution is masked (rem < 0).
    def in_map(c, i):
        return (jnp.minimum(c * blocks_per_core + i, blocks_total - 1), 0)

    if cores > 1:
        # Multi-TC chip (v7x): shard the streaming loop across TensorCores; each
        # core owns its own (1, 4, 8, 128) partial-sum block.
        dims = (pltpu.CORE_PARALLEL, pltpu.ARBITRARY)
    else:
        dims = ("parallel", "arbitrary")

    # VMEM/step: 2 inputs x 2 buffers x tm*128*itemsize (tm=4096 f32 -> 8 MiB),
    # within default scoped VMEM on v5e/v6e/v7x; no vmem_limit_bytes needed.
    partials = pl.pallas_call(
        kernel,
        out_shape=jax.ShapeDtypeStruct((cores, 4, SUBLANE, LANE), jnp.float32),
        grid=(cores, blocks_per_core),
        in_specs=[
            pl.BlockSpec((tm, LANE), in_map),
            pl.BlockSpec((tm, LANE), in_map),
        ],
        out_specs=pl.BlockSpec((1, 4, SUBLANE, LANE), lambda c, i: (c, 0, 0, 0)),
        compiler_params=pltpu.CompilerParams(dimension_semantics=dims),
    )(x, y)

    # Tiny epilogue: one cross-lane reduce of (cores, 4, 8, 128) + scalar math.
    sums = jnp.sum(partials, axis=(0, 2, 3))  # (4,)
    bce_sum, inter, pred_sum, y_sum = sums[0], sums[1], sums[2], sums[3]

    bce_loss = bce_sum / jnp.float32(n)                        # reduction='mean'
    dice_loss = 1.0 - (2.0 * inter + smooth) / (pred_sum + y_sum + smooth)
    return bce_loss + dice_loss


def _reference(output, true_mask, pos_weight=POS_WEIGHT, smooth=SMOOTH):
    x = output.astype(jnp.float32)
    y = true_mask.astype(jnp.float32)
    bce = jnp.mean((1.0 - y) * x + (1.0 + (pos_weight - 1.0) * y) * jax.nn.softplus(-x))
    pred = jax.nn.sigmoid(x)
    inter = jnp.sum(pred * y)
    union = jnp.sum(pred) + jnp.sum(y)
    dice = 1.0 - (2.0 * inter + smooth) / (union + smooth)
    return bce + dice


if __name__ == "__main__":
    key = jax.random.PRNGKey(0)
    k1, k2 = jax.random.split(key)

    # 1) NCHW logits + binary target mask, fully aligned (n = 2048, multiple of 128).
    B, C, H, W = 2, 4, 16, 16
    logits = jax.random.normal(k1, (B, C, H, W), dtype=jnp.float32) * 2.0
    mask = (jax.random.uniform(k2, (B, C, H, W)) > 0.5).astype(jnp.float32)
    loss = jax.block_until_ready(bce_plus_dice_loss(logits, mask))
    ref = _reference(logits, mask)
    assert jnp.isfinite(loss), "loss is not finite"
    assert jnp.allclose(loss, ref, rtol=1e-5, atol=1e-5), (loss, ref)

    # 2) Ragged grid: rows=20 -> partial last block, exercises the in-kernel mask.
    logits2 = jax.random.normal(k1, (2, 4, 16, 20), dtype=jnp.float32) * 2.0
    mask2 = (jax.random.uniform(k2, (2, 4, 16, 20)) > 0.5).astype(jnp.float32)
    loss2 = jax.block_until_ready(bce_plus_dice_loss(logits2, mask2))
    ref2 = _reference(logits2, mask2)
    assert jnp.isfinite(loss2), "loss (ragged) is not finite"
    assert jnp.allclose(loss2, ref2, rtol=1e-5, atol=1e-5), (loss2, ref2)

    # 3) bf16 inputs streamed uncast (halved HBM traffic), tm rounded to 16.
    logits3 = logits.astype(jnp.bfloat16)
    mask3 = mask.astype(jnp.bfloat16)
    loss3 = jax.block_until_ready(bce_plus_dice_loss(logits3, mask3))
    ref3 = _reference(logits3, mask3)
    assert jnp.isfinite(loss3), "loss (bf16) is not finite"
    assert jnp.allclose(loss3, ref3, rtol=1e-5, atol=1e-5), (loss3, ref3)

    print("KERNEL_OK")
</pallas_src>

<mosaic_0001>
module attributes {stable_mosaic.version = 11 : i64} {
  func.func @_loss_kernel(%arg0: i32, %arg1: i32, %arg2: memref<16x128xf32, #tpu.memory_space<vmem>>, %arg3: memref<16x128xf32, #tpu.memory_space<vmem>>, %arg4: memref<1x4x8x128xf32, #tpu.memory_space<vmem>>) attributes {dimension_semantics = [#tpu.dimension_semantics<parallel>, #tpu.dimension_semantics<arbitrary>], iteration_bounds = array<i64: 1, 1>, scalar_prefetch = 0 : i64, scratch_operands = 0 : i64, tpu.core_type = #tpu.core_type<tc>, window_params = [{transform_indices = @transform_0, window_bounds = array<i64: 16, 128>}, {transform_indices = @transform_1, window_bounds = array<i64: 16, 128>}, {transform_indices = @transform_2, window_bounds = array<i64: 1, 4, 8, 128>}]} {
    %c0_i32 = arith.constant 0 : i32
    %0 = arith.cmpi eq, %arg1, %c0_i32 : i32
    %1 = arith.extui %0 : i1 to i32
    %c0_i32_0 = arith.constant 0 : i32
    %2 = arith.cmpi ne, %1, %c0_i32_0 : i32
    scf.if %2 {
      %cst_14 = arith.constant 0.000000e+00 : f32
      %41 = vector.broadcast %cst_14 : f32 to vector<1x4x8x128xf32>
      %c0_15 = arith.constant 0 : index
      %c0_16 = arith.constant 0 : index
      %c0_17 = arith.constant 0 : index
      %c0_18 = arith.constant 0 : index
      %42 = vector.load %arg4[%c0_15, %c0_16, %c0_17, %c0_18] : memref<1x4x8x128xf32, #tpu.memory_space<vmem>>, vector<1x4x8x128xf32>
      tpu.vector_store %arg4[%c0_15, %c0_16, %c0_17, %c0_18], %41 {strides = array<i32>} : memref<1x4x8x128xf32, #tpu.memory_space<vmem>>, vector<1x4x8x128xf32>,
    } else {
    }
    %c0 = arith.constant 0 : index
    %c0_1 = arith.constant 0 : index
    %3 = vector.load %arg2[%c0, %c0_1] : memref<16x128xf32, #tpu.memory_space<vmem>>, vector<16x128xf32>
    %c0_2 = arith.constant 0 : index
    %c0_3 = arith.constant 0 : index
    %4 = vector.load %arg3[%c0_2, %c0_3] : memref<16x128xf32, #tpu.memory_space<vmem>>, vector<16x128xf32>
    %5 = math.absf %3 : vector<16x128xf32>
    %cst = arith.constant 0.000000e+00 : f32
    %6 = vector.broadcast %cst : f32 to vector<16x128xf32>
    %7 = arith.subf %6, %5 : vector<16x128xf32>
    %8 = math.exp %7 : vector<16x128xf32>
    %cst_4 = arith.constant 0.000000e+00 : f32
    %9 = vector.broadcast %cst_4 : f32 to vector<16x128xf32>
    %10 = arith.subf %9, %3 : vector<16x128xf32>
    %cst_5 = arith.constant 0.000000e+00 : f32
    %11 = vector.broadcast %cst_5 : f32 to vector<16x128xf32>
    %12 = arith.maximumf %10, %11 : vector<16x128xf32>
    %13 = math.log1p %8 : vector<16x128xf32>
    %14 = arith.addf %12, %13 : vector<16x128xf32>
    %15 = arith.addf %3, %14 : vector<16x128xf32>
    %cst_6 = arith.constant -0.774999976 : f32
    %16 = vector.broadcast %cst_6 : f32 to vector<16x128xf32>
    %17 = arith.mulf %16, %14 : vector<16x128xf32>
    %18 = arith.subf %17, %3 : vector<16x128xf32>
    %19 = arith.mulf %4, %18 : vector<16x128xf32>
    %20 = arith.addf %15, %19 : vector<16x128xf32>
    %cst_7 = arith.constant 1.000000e+00 : f32
    %21 = vector.broadcast %cst_7 : f32 to vector<16x128xf32>
    %22 = arith.addf %21, %8 : vector<16x128xf32>
    %cst_8 = arith.constant 1.000000e+00 : f32
    %23 = vector.broadcast %cst_8 : f32 to vector<16x128xf32>
    %24 = arith.divf %23, %22 : vector<16x128xf32>
    %cst_9 = arith.constant 0.000000e+00 : f32
    %25 = vector.broadcast %cst_9 : f32 to vector<16x128xf32>
    %26 = arith.cmpf oge, %3, %25 : vector<16x128xf32>
    %27 = arith.mulf %8, %24 : vector<16x128xf32>
    %28 = arith.select %26, %24, %27 : vector<16x128xi1>, vector<16x128xf32>
    %29 = arith.mulf %28, %4 : vector<16x128xf32>
    %c1_i32 = arith.constant 1 : i32
    %30 = arith.muli %arg0, %c1_i32 : i32
    %31 = arith.addi %30, %arg1 : i32
    %c16_i32 = arith.constant 16 : i32
    %32 = arith.muli %31, %c16_i32 : i32
    %c128_i32 = arith.constant 128 : i32
    %33 = arith.muli %32, %c128_i32 : i32
    %c2048_i32 = arith.constant 2048 : i32
    %34 = arith.subi %c2048_i32, %33 : i32
    %c2048_i32_10 = arith.constant 2048 : i32
    %35 = arith.cmpi sge, %34, %c2048_i32_10 : i32
    %36 = arith.extui %35 : i1 to i32
    %c0_i32_11 = arith.constant 0 : i32
    %37 = arith.cmpi ne, %36, %c0_i32_11 : i32
    scf.if %37 {
      %c0_14 = arith.constant 0 : index
      %c0_15 = arith.constant 0 : index
      %c0_16 = arith.constant 0 : index
      %c0_17 = arith.constant 0 : index
      %41 = vector.load %arg4[%c0_14, %c0_15, %c0_16, %c0_17] : memref<1x4x8x128xf32, #tpu.memory_space<vmem>>, vector<1x1x8x128xf32>
      %42 = vector.shape_cast %41 : vector<1x1x8x128xf32> to vector<8x128xf32>
      %43 = vector.shape_cast %20 : vector<16x128xf32> to vector<2x8x128xf32>
      %cst_18 = arith.constant dense<0.000000e+00> : vector<8x128xf32>
      %44 = vector.multi_reduction <add>, %43, %cst_18 [0] : vector<2x8x128xf32> to vector<8x128xf32>
      %45 = arith.addf %42, %44 : vector<8x128xf32>
      %c0_19 = arith.constant 0 : index
      %c0_20 = arith.constant 0 : index
      %c0_21 = arith.constant 0 : index
      %c0_22 = arith.constant 0 : index
      %46 = vector.load %arg4[%c0_19, %c0_20, %c0_21, %c0_22] : memref<1x4x8x128xf32, #tpu.memory_space<vmem>>, vector<1x1x8x128xf32>
      %47 = vector.shape_cast %46 : vector<1x1x8x128xf32> to vector<8x128xf32>
      %48 = vector.shape_cast %45 : vector<8x128xf32> to vector<1x1x8x128xf32>
      tpu.vector_store %arg4[%c0_19, %c0_20, %c0_21, %c0_22], %48 {strides = array<i32>} : memref<1x4x8x128xf32, #tpu.memory_space<vmem>>, vector<1x1x8x128xf32>,
      %c0_23 = arith.constant 0 : index
      %c1 = arith.constant 1 : index
      %c0_24 = arith.constant 0 : index
      %c0_25 = arith.constant 0 : index
      %49 = vector.load %arg4[%c0_23, %c1, %c0_24, %c0_25] : memref<1x4x8x128xf32, #tpu.memory_space<vmem>>, vector<1x1x8x128xf32>
      %50 = vector.shape_cast %49 : vector<1x1x8x128xf32> to vector<8x128xf32>
      %51 = vector.shape_cast %29 : vector<16x128xf32> to vector<2x8x128xf32>
      %cst_26 = arith.constant dense<0.000000e+00> : vector<8x128xf32>
      %52 = vector.multi_reduction <add>, %51, %cst_26 [0] : vector<2x8x128xf32> to vector<8x128xf32>
      %53 = arith.addf %50, %52 : vector<8x128xf32>
      %c0_27 = arith.constant 0 : index
      %c1_28 = arith.constant 1 : index
      %c0_29 = arith.constant 0 : index
      %c0_30 = arith.constant 0 : index
      %54 = vector.load %arg4[%c0_27, %c1_28, %c0_29, %c0_30] : memref<1x4x8x128xf32, #tpu.memory_space<vmem>>, vector<1x1x8x128xf32>
      %55 = vector.shape_cast %54 : vector<1x1x8x128xf32> to vector<8x128xf32>
      %56 = vector.shape_cast %53 : vector<8x128xf32> to vector<1x1x8x128xf32>
      tpu.vector_store %arg4[%c0_27, %c1_28, %c0_29, %c0_30], %56 {strides = array<i32>} : memref<1x4x8x128xf32, #tpu.memory_space<vmem>>, vector<1x1x8x128xf32>,
      %c0_31 = arith.constant 0 : index
      %c2 = arith.constant 2 : index
      %c0_32 = arith.constant 0 : index
      %c0_33 = arith.constant 0 : index
      %57 = vector.load %arg4[%c0_31, %c2, %c0_32, %c0_33] : memref<1x4x8x128xf32, #tpu.memory_space<vmem>>, vector<1x1x8x128xf32>
      %58 = vector.shape_cast %57 : vector<1x1x8x128xf32> to vector<8x128xf32>
      %59 = vector.shape_cast %28 : vector<16x128xf32> to vector<2x8x128xf32>
      %cst_34 = arith.constant dense<0.000000e+00> : vector<8x128xf32>
      %60 = vector.multi_reduction <add>, %59, %cst_34 [0] : vector<2x8x128xf32> to vector<8x128xf32>
      %61 = arith.addf %58, %60 : vector<8x128xf32>
      %c0_35 = arith.constant 0 : index
      %c2_36 = arith.constant 2 : index
      %c0_37 = arith.constant 0 : index
      %c0_38 = arith.constant 0 : index
      %62 = vector.load %arg4[%c0_35, %c2_36, %c0_37, %c0_38] : memref<1x4x8x128xf32, #tpu.memory_space<vmem>>, vector<1x1x8x128xf32>
      %63 = vector.shape_cast %62 : vector<1x1x8x128xf32> to vector<8x128xf32>
      %64 = vector.shape_cast %61 : vector<8x128xf32> to vector<1x1x8x128xf32>
      tpu.vector_store %arg4[%c0_35, %c2_36, %c0_37, %c0_38], %64 {strides = array<i32>} : memref<1x4x8x128xf32, #tpu.memory_space<vmem>>, vector<1x1x8x128xf32>,
      %c0_39 = arith.constant 0 : index
      %c3 = arith.constant 3 : index
      %c0_40 = arith.constant 0 : index
      %c0_41 = arith.constant 0 : index
      %65 = vector.load %arg4[%c0_39, %c3, %c0_40, %c0_41] : memref<1x4x8x128xf32, #tpu.memory_space<vmem>>, vector<1x1x8x128xf32>
      %66 = vector.shape_cast %65 : vector<1x1x8x128xf32> to vector<8x128xf32>
      %67 = vector.shape_cast %4 : vector<16x128xf32> to vector<2x8x128xf32>
      %cst_42 = arith.constant dense<0.000000e+00> : vector<8x128xf32>
      %68 = vector.multi_reduction <add>, %67, %cst_42 [0] : vector<2x8x128xf32> to vector<8x128xf32>
      %69 = arith.addf %66, %68 : vector<8x128xf32>
      %c0_43 = arith.constant 0 : index
      %c3_44 = arith.constant 3 : index
      %c0_45 = arith.constant 0 : index
      %c0_46 = arith.constant 0 : index
      %70 = vector.load %arg4[%c0_43, %c3_44, %c0_45, %c0_46] : memref<1x4x8x128xf32, #tpu.memory_space<vmem>>, vector<1x1x8x128xf32>
      %71 = vector.shape_cast %70 : vector<1x1x8x128xf32> to vector<8x128xf32>
      %72 = vector.shape_cast %69 : vector<8x128xf32> to vector<1x1x8x128xf32>
      tpu.vector_store %arg4[%c0_43, %c3_44, %c0_45, %c0_46], %72 {strides = array<i32>} : memref<1x4x8x128xf32, #tpu.memory_space<vmem>>, vector<1x1x8x128xf32>,
    } else {
    }
    %c2048_i32_12 = arith.constant 2048 : i32
    %38 = arith.cmpi slt, %34, %c2048_i32_12 : i32
    %39 = arith.extui %38 : i1 to i32
    %c0_i32_13 = arith.constant 0 : i32
    %40 = arith.cmpi ne, %39, %c0_i32_13 : i32
    scf.if %40 {
      %41 = tpu.iota {dimensions = array<i32: 0>} : vector<16x128xi32>
      %c128_i32_14 = arith.constant 128 : i32
      %42 = vector.broadcast %c128_i32_14 : i32 to vector<16x128xi32>
      %43 = arith.muli %41, %42 : vector<16x128xi32>
      %44 = tpu.iota {dimensions = array<i32: 1>} : vector<16x128xi32>
      %45 = arith.addi %43, %44 : vector<16x128xi32>
      %46 = vector.broadcast %34 : i32 to vector<16x128xi32>
      %47 = arith.cmpi slt, %45, %46 : vector<16x128xi32>
      %cst_15 = arith.constant 0.000000e+00 : f32
      %48 = vector.broadcast %cst_15 : f32 to vector<16x128xf32>
      %49 = arith.select %47, %20, %48 : vector<16x128xi1>, vector<16x128xf32>
      %cst_16 = arith.constant 0.000000e+00 : f32
      %50 = vector.broadcast %cst_16 : f32 to vector<16x128xf32>
      %51 = arith.select %47, %29, %50 : vector<16x128xi1>, vector<16x128xf32>
      %cst_17 = arith.constant 0.000000e+00 : f32
      %52 = vector.broadcast %cst_17 : f32 to vector<16x128xf32>
      %53 = arith.select %47, %28, %52 : vector<16x128xi1>, vector<16x128xf32>
      %cst_18 = arith.constant 0.000000e+00 : f32
      %54 = vector.broadcast %cst_18 : f32 to vector<16x128xf32>
      %55 = arith.select %47, %4, %54 : vector<16x128xi1>, vector<16x128xf32>
      %c0_19 = arith.constant 0 : index
      %c0_20 = arith.constant 0 : index
      %c0_21 = arith.constant 0 : index
      %c0_22 = arith.constant 0 : index
      %56 = vector.load %arg4[%c0_19, %c0_20, %c0_21, %c0_22] : memref<1x4x8x128xf32, #tpu.memory_space<vmem>>, vector<1x1x8x128xf32>
      %57 = vector.shape_cast %56 : vector<1x1x8x128xf32> to vector<8x128xf32>
      %58 = vector.shape_cast %49 : vector<16x128xf32> to vector<2x8x128xf32>
      %cst_23 = arith.constant dense<0.000000e+00> : vector<8x128xf32>
      %59 = vector.multi_reduction <add>, %58, %cst_23 [0] : vector<2x8x128xf32> to vector<8x128xf32>
      %60 = arith.addf %57, %59 : vector<8x128xf32>
      %c0_24 = arith.constant 0 : index
      %c0_25 = arith.constant 0 : index
      %c0_26 = arith.constant 0 : index
      %c0_27 = arith.constant 0 : index
      %61 = vector.load %arg4[%c0_24, %c0_25, %c0_26, %c0_27] : memref<1x4x8x128xf32, #tpu.memory_space<vmem>>, vector<1x1x8x128xf32>
      %62 = vector.shape_cast %61 : vector<1x1x8x128xf32> to vector<8x128xf32>
      %63 = vector.shape_cast %60 : vector<8x128xf32> to vector<1x1x8x128xf32>
      tpu.vector_store %arg4[%c0_24, %c0_25, %c0_26, %c0_27], %63 {strides = array<i32>} : memref<1x4x8x128xf32, #tpu.memory_space<vmem>>, vector<1x1x8x128xf32>,
      %c0_28 = arith.constant 0 : index
      %c1 = arith.constant 1 : index
      %c0_29 = arith.constant 0 : index
      %c0_30 = arith.constant 0 : index
      %64 = vector.load %arg4[%c0_28, %c1, %c0_29, %c0_30] : memref<1x4x8x128xf32, #tpu.memory_space<vmem>>, vector<1x1x8x128xf32>
      %65 = vector.shape_cast %64 : vector<1x1x8x128xf32> to vector<8x128xf32>
      %66 = vector.shape_cast %51 : vector<16x128xf32> to vector<2x8x128xf32>
      %cst_31 = arith.constant dense<0.000000e+00> : vector<8x128xf32>
      %67 = vector.multi_reduction <add>, %66, %cst_31 [0] : vector<2x8x128xf32> to vector<8x128xf32>
      %68 = arith.addf %65, %67 : vector<8x128xf32>
      %c0_32 = arith.constant 0 : index
      %c1_33 = arith.constant 1 : index
      %c0_34 = arith.constant 0 : index
      %c0_35 = arith.constant 0 : index
      %69 = vector.load %arg4[%c0_32, %c1_33, %c0_34, %c0_35] : memref<1x4x8x128xf32, #tpu.memory_space<vmem>>, vector<1x1x8x128xf32>
      %70 = vector.shape_cast %69 : vector<1x1x8x128xf32> to vector<8x128xf32>
      %71 = vector.shape_cast %68 : vector<8x128xf32> to vector<1x1x8x128xf32>
      tpu.vector_store %arg4[%c0_32, %c1_33, %c0_34, %c0_35], %71 {strides = array<i32>} : memref<1x4x8x128xf32, #tpu.memory_space<vmem>>, vector<1x1x8x128xf32>,
      %c0_36 = arith.constant 0 : index
      %c2 = arith.constant 2 : index
      %c0_37 = arith.constant 0 : index
      %c0_38 = arith.constant 0 : index
      %72 = vector.load %arg4[%c0_36, %c2, %c0_37, %c0_38] : memref<1x4x8x128xf32, #tpu.memory_space<vmem>>, vector<1x1x8x128xf32>
      %73 = vector.shape_cast %72 : vector<1x1x8x128xf32> to vector<8x128xf32>
      %74 = vector.shape_cast %53 : vector<16x128xf32> to vector<2x8x128xf32>
      %cst_39 = arith.constant dense<0.000000e+00> : vector<8x128xf32>
      %75 = vector.multi_reduction <add>, %74, %cst_39 [0] : vector<2x8x128xf32> to vector<8x128xf32>
      %76 = arith.addf %73, %75 : vector<8x128xf32>
      %c0_40 = arith.constant 0 : index
      %c2_41 = arith.constant 2 : index
      %c0_42 = arith.constant 0 : index
      %c0_43 = arith.constant 0 : index
      %77 = vector.load %arg4[%c0_40, %c2_41, %c0_42, %c0_43] : memref<1x4x8x128xf32, #tpu.memory_space<vmem>>, vector<1x1x8x128xf32>
      %78 = vector.shape_cast %77 : vector<1x1x8x128xf32> to vector<8x128xf32>
      %79 = vector.shape_cast %76 : vector<8x128xf32> to vector<1x1x8x128xf32>
      tpu.vector_store %arg4[%c0_40, %c2_41, %c0_42, %c0_43], %79 {strides = array<i32>} : memref<1x4x8x128xf32, #tpu.memory_space<vmem>>, vector<1x1x8x128xf32>,
      %c0_44 = arith.constant 0 : index
      %c3 = arith.constant 3 : index
      %c0_45 = arith.constant 0 : index
      %c0_46 = arith.constant 0 : index
      %80 = vector.load %arg4[%c0_44, %c3, %c0_45, %c0_46] : memref<1x4x8x128xf32, #tpu.memory_space<vmem>>, vector<1x1x8x128xf32>
      %81 = vector.shape_cast %80 : vector<1x1x8x128xf32> to vector<8x128xf32>
      %82 = vector.shape_cast %55 : vector<16x128xf32> to vector<2x8x128xf32>
      %cst_47 = arith.constant dense<0.000000e+00> : vector<8x128xf32>
      %83 = vector.multi_reduction <add>, %82, %cst_47 [0] : vector<2x8x128xf32> to vector<8x128xf32>
      %84 = arith.addf %81, %83 : vector<8x128xf32>
      %c0_48 = arith.constant 0 : index
      %c3_49 = arith.constant 3 : index
      %c0_50 = arith.constant 0 : index
      %c0_51 = arith.constant 0 : index
      %85 = vector.load %arg4[%c0_48, %c3_49, %c0_50, %c0_51] : memref<1x4x8x128xf32, #tpu.memory_space<vmem>>, vector<1x1x8x128xf32>
      %86 = vector.shape_cast %85 : vector<1x1x8x128xf32> to vector<8x128xf32>
      %87 = vector.shape_cast %84 : vector<8x128xf32> to vector<1x1x8x128xf32>
      tpu.vector_store %arg4[%c0_48, %c3_49, %c0_50, %c0_51], %87 {strides = array<i32>} : memref<1x4x8x128xf32, #tpu.memory_space<vmem>>, vector<1x1x8x128xf32>,
    } else {
    }
    return
  }
  func.func @transform_0(%arg0: i32, %arg1: i32) -> (i32, i32) {
    %c1_i32 = arith.constant 1 : i32
    %0 = arith.muli %arg0, %c1_i32 : i32
    %1 = arith.addi %0, %arg1 : i32
    %c0_i32 = arith.constant 0 : i32
    %2 = arith.minsi %1, %c0_i32 : i32
    %c0_i32_0 = arith.constant 0 : i32
    %c0_i32_1 = arith.constant 0 : i32
    return %2, %c0_i32_0 : i32, i32
  }
  func.func @transform_1(%arg0: i32, %arg1: i32) -> (i32, i32) {
    %c1_i32 = arith.constant 1 : i32
    %0 = arith.muli %arg0, %c1_i32 : i32
    %1 = arith.addi %0, %arg1 : i32
    %c0_i32 = arith.constant 0 : i32
    %2 = arith.minsi %1, %c0_i32 : i32
    %c0_i32_0 = arith.constant 0 : i32
    %c0_i32_1 = arith.constant 0 : i32
    return %2, %c0_i32_0 : i32, i32
  }
  func.func @transform_2(%arg0: i32, %arg1: i32) -> (i32, i32, i32, i32) {
    %c0_i32 = arith.constant 0 : i32
    %c0_i32_0 = arith.constant 0 : i32
    %c0_i32_1 = arith.constant 0 : i32
    %c0_i32_2 = arith.constant 0 : i32
    return %arg0, %c0_i32, %c0_i32_0, %c0_i32_1 : i32, i32, i32, i32
  }
}

</mosaic_0001>

<llo_original>
// kernel: tpu_custom_call.1
$region0: #{tpu_custom_call.1}
  #allocation0 [shape = 'u32[]', space=smem, size = 0x4, offset = 0x4, fixed_abs, tag = 'smem constant byte address 0x4 - core index']
  #allocation1 [shape = 'u32[72,128]{1,0:T(1,128)}', space=vmem, size = 0x9000, scoped, tag = 'internal scratch']
  %s0 = inlined_call_operand.hbm [shape: f32[16,128], index: 0, kind: input, shape index: {}]
  %s1 = inlined_call_operand.hbm [shape: f32[16,128], index: 1, kind: input, shape index: {}]
  %s2 = inlined_call_operand.hbm [shape: f32[1,4,8,128], index: 2, kind: output, shape index: {}]
  %s3 = sld [smem:[#allocation0]]
  $region38: #{tpu_custom_call.1} parent=0
    _
  %s5 = ssub.s32 1, %s3
  %s6 = scalar_select 0, %s5, %s3
  $region1: #{tpu_custom_call.1} parent=0
    #allocation2 [shape = 'u8[8192]{0}', space=vmem, size = 0x2000, scoped, tag = 'input window, operand 0, single buffered']
    #allocation3 [shape = 's32[1]{0}', space=sflag, size = 0x4, scoped, tag = 'scoped memory for tpu_custom_call.1']
    #allocation4 [shape = 's32[1]{0}', space=sflag, size = 0x4, scoped, tag = 'scoped memory for tpu_custom_call.1']
    #allocation5 [shape = 'u8[8192]{0}', space=vmem, size = 0x2000, scoped, tag = 'input window, operand 1, single buffered']
    #allocation6 [shape = 's32[1]{0}', space=sflag, size = 0x4, scoped, tag = 'scoped memory for tpu_custom_call.1']
    #allocation7 [shape = 'u8[16384]{0}', space=vmem, size = 0x4000, scoped, tag = 'output window, operand 0, single buffered']
    %7 = vsyncpa [#allocation3], 0
    %8 = vsyncpa [#allocation6], 0
    %9 = vsyncpa [#allocation4], 0
    // Predicated region
    $region2: #{tpu_custom_call.1} parent=1 // pred_check
      _
    $region3: #{tpu_custom_call.1} parent=1 // pred_check_branch
      %11 = sbr.rel (0) target = $region5
    $region4: #{tpu_custom_call.1} parent=1 // pred_region
      %s12 = sadd.s32 0, 0
      %p13 = scmp.lt.s32.totalorder %s12, 0
      %s14 = scalar_select %p13, %s12, 0
      %s15 = smul.u32 2, %s14
      %17 = vsyncadd [#allocation3], 0
      %s18 = smul.addr %s15, 8
      %s19 = scalar_lea.hbm %s0, %s18
      %s20 = sshll.u32 %s19, 4
      %s21 = int_to_ptr.hbm [resolvable:$true] %s20
      %s22 = sshll.u32 [#allocation2], 4
      %s23 = int_to_ptr.vmem [resolvable:$true] %s22
      %28 = dma.hbm_to_vmem [thread:$0]  %s21, 256, %s23, [#allocation3], 128, 128, 8
    $region5: #{tpu_custom_call.1} parent=1 // pred_fallthru
      _
    // Predicated region
    $region6: #{tpu_custom_call.1} parent=1 // pred_check
      _
    $region7: #{tpu_custom_call.1} parent=1 // pred_check_branch
      %30 = sbr.rel (0) target = $region9
    $region8: #{tpu_custom_call.1} parent=1 // pred_region
      %s31 = sadd.s32 0, 0
      %p32 = scmp.lt.s32.totalorder %s31, 0
      %s33 = scalar_select %p32, %s31, 0
      %s34 = smul.u32 2, %s33
      %36 = vsyncadd [#allocation6], 0
      %s37 = smul.addr %s34, 8
      %s38 = scalar_lea.hbm %s1, %s37
      %s39 = sshll.u32 %s38, 4
      %s40 = int_to_ptr.hbm [resolvable:$true] %s39
      %s41 = sshll.u32 [#allocation5], 4
      %s42 = int_to_ptr.vmem [resolvable:$true] %s41
      %47 = dma.hbm_to_vmem [thread:$0]  %s40, 256, %s42, [#allocation6], 128, 128, 8
    $region9: #{tpu_custom_call.1} parent=1 // pred_fallthru
      _
    // Predicated region
    $region10: #{tpu_custom_call.1} parent=1 // pred_check
      _
    $region11: #{tpu_custom_call.1} parent=1 // pred_check_branch
      %49 = sbr.rel (0) target = $region13
    $region12: #{tpu_custom_call.1} parent=1 // pred_region
      %51 = dma.done [#allocation3], 256
    $region13: #{tpu_custom_call.1} parent=1 // pred_fallthru
      _
    // Predicated region
    $region14: #{tpu_custom_call.1} parent=1 // pred_check
      _
    $region15: #{tpu_custom_call.1} parent=1 // pred_check_branch
      %53 = sbr.rel (0) target = $region17
    $region16: #{tpu_custom_call.1} parent=1 // pred_region
      %55 = dma.done [#allocation6], 256
    $region17: #{tpu_custom_call.1} parent=1 // pred_fallthru
      _
    %s56 = sadd.s32 0, 0
    %p57 = scmp.lt.s32.totalorder %s56, 0
    %s58 = scalar_select %p57, %s56, 0
    %s59 = smul.u32 2, %s58
    %s60 = sadd.s32 0, 0
    %p61 = scmp.lt.s32.totalorder %s60, 0
    %s62 = scalar_select %p61, %s60, 0
    %s63 = smul.u32 2, %s62
    %p64 = scmp.eq.s32.totalorder 0, 0
    // Predicated region
    $region18: #{tpu_custom_call.1} parent=1 // pred_check
      %p65 = pneg %p64
    $region19: #{tpu_custom_call.1} parent=1 // pred_check_branch
      %67 = sbr.rel (%p65) target = $region21
    $region20: #{tpu_custom_call.1} parent=1 // pred_region
      %68 = vst [vmem:[#allocation7] sm:$0xff] 0.0
      %69 = vst [vmem:[#allocation7 + $0x8] sm:$0xff] 0.0
      %70 = vst [vmem:[#allocation7 + $0x10] sm:$0xff] 0.0
      %71 = vst [vmem:[#allocation7 + $0x18] sm:$0xff] 0.0
    $region21: #{tpu_custom_call.1} parent=1 // pred_fallthru
      _
    %v72 = vld [vmem:[#allocation2] sm:$0xff]
    %v73 = vld [vmem:[#allocation2 + $0x8] sm:$0xff]
    %v74 = vld [vmem:[#allocation5] sm:$0xff]
    %v75 = vld [vmem:[#allocation5 + $0x8] sm:$0xff]
    %v76 = vand.u32 2147483647, %v72
    %v77 = vand.u32 2147483647, %v73
    %v78 = vsub.f32 0.0, %v76
    %v79 = vsub.f32 0.0, %v77
    %v80 = vmul.f32 %v78, 1.442695
    %v81 = vpow.pop %v80
    %v82 = vmul.f32 %v79, 1.442695
    %v83 = vpow.pop %v82
    %v84 = vsub.f32 0.0, %v72
    %v85 = vsub.f32 0.0, %v73
    %v86 = vmax.f32 %v84, 0.0
    %v87 = vmax.f32 %v85, 0.0
    %v88 = vadd.f32 %v81, 1.0
    %v89 = vlog2.pop %v88
    %v90 = vmul.f32 %v89, 0.6931472
    %v91 = vmul.f32 -0.5, %v81
    %v92 = vadd.f32 %v91, 1.0
    %v93 = vmul.f32 %v92, %v81
    %v94 = vand.u32 2147483647, %v81
    %vm95 = vcmp.lt.f32.partialorder %v94, 0.0004427343
    %v96 = vsel %vm95, %v93, %v90
    %v97 = vadd.f32 %v83, 1.0
    %v98 = vlog2.pop %v97
    %v99 = vmul.f32 %v98, 0.6931472
    %v100 = vmul.f32 -0.5, %v83
    %v101 = vadd.f32 %v100, 1.0
    %v102 = vmul.f32 %v101, %v83
    %v103 = vand.u32 2147483647, %v83
    %vm104 = vcmp.lt.f32.partialorder %v103, 0.0004427343
    %v105 = vsel %vm104, %v102, %v99
    %v106 = vadd.f32 %v86, %v96
    %v107 = vadd.f32 %v87, %v105
    %v108 = vadd.f32 %v72, %v106
    %v109 = vadd.f32 %v73, %v107
    %v110 = vmul.f32 %v106, -0.775
    %v111 = vmul.f32 %v107, -0.775
    %v112 = vsub.f32 %v110, %v72
    %v113 = vsub.f32 %v111, %v73
    %v114 = vmul.f32 %v74, %v112
    %v115 = vmul.f32 %v75, %v113
    %v116 = vadd.f32 %v108, %v114
    %v117 = vadd.f32 %v109, %v115
    %v118 = vadd.f32 %v81, 1.0
    %v119 = vadd.f32 %v83, 1.0
    %v120 = vrcp.pop %v118
    %v121 = vmul.f32 %v118, %v120
    %v122 = vsub.f32 1.0, %v121
    %v123 = vmul.f32 %v120, %v122
    %v124 = vadd.f32 %v120, %v123
    %vm125 = vweird.f32 %v118
    %vm126 = vweird.f32 %v120
    %vm127 = vmor %vm125, %vm126
    %v128 = vsel %vm127, %v120, %v124
    %v129 = vand.u32 2147483647, %v118
    %vm130 = vcmp.eq.f32.partialorder %v129, 8.507059e+37
    %v131 = vand.u32 %v118, 2147483648
    %v132 = vor.u32 1.1754944e-38, %v131
    %v133 = vsel %vm130, %v132, %v128
    %v134 = vmul.f32 1.0, %v133
    %v135 = vrcp.pop %v119
    %v136 = vmul.f32 %v119, %v135
    %v137 = vsub.f32 1.0, %v136
    %v138 = vmul.f32 %v135, %v137
    %v139 = vadd.f32 %v135, %v138
    %vm140 = vweird.f32 %v119
    %vm141 = vweird.f32 %v135
    %vm142 = vmor %vm140, %vm141
    %v143 = vsel %vm142, %v135, %v139
    %v144 = vand.u32 2147483647, %v119
    %vm145 = vcmp.eq.f32.partialorder %v144, 8.507059e+37
    %v146 = vand.u32 %v119, 2147483648
    %v147 = vor.u32 1.1754944e-38, %v146
    %v148 = vsel %vm145, %v147, %v143
    %v149 = vmul.f32 1.0, %v148
    %vm150 = vcmp.ge.f32.partialorder %v72, 0.0
    %vm151 = vcmp.ge.f32.partialorder %v73, 0.0
    %v152 = vmul.f32 %v81, %v134
    %v153 = vmul.f32 %v83, %v149
    %v154 = vsel %vm150, %v134, %v152
    %v155 = vsel %vm151, %v149, %v153
    %v156 = vmul.f32 %v154, %v74
    %v157 = vmul.f32 %v155, %v75
    %s158 = sadd.s32 0, 0
    %s159 = smul.u32 %s158, 2048
    %s160 = ssub.s32 2048, %s159
    %p161 = scmp.ge.s32.totalorder %s160, 2048
    // Predicated region
    $region22: #{tpu_custom_call.1} parent=1 // pred_check
      %p162 = pneg %p161
    $region23: #{tpu_custom_call.1} parent=1 // pred_check_branch
      %164 = sbr.rel (%p162) target = $region25
    $region24: #{tpu_custom_call.1} parent=1 // pred_region
      %v165 = vld [vmem:[#allocation7] sm:$0xff]
      %v166 = vadd.f32 %v116, %v117
      %v167 = vadd.f32 %v165, %v166
      %168 = vst [vmem:[#allocation7] sm:$0xff] %v167
      %s169 = scalar_lea.vmem [#allocation7], 8
      %v170 = vld [vmem:[%s169] sm:$0xff]
      %v171 = vadd.f32 %v156, %v157
      %v172 = vadd.f32 %v170, %v171
      %173 = vst [vmem:[%s169] sm:$0xff] %v172
      %s174 = scalar_lea.vmem [#allocation7], 16
      %v175 = vld [vmem:[%s174] sm:$0xff]
      %v176 = vadd.f32 %v154, %v155
      %v177 = vadd.f32 %v175, %v176
      %178 = vst [vmem:[%s174] sm:$0xff] %v177
      %s179 = scalar_lea.vmem [#allocation7], 24
      %v180 = vld [vmem:[%s179] sm:$0xff]
      %v181 = vadd.f32 %v74, %v75
      %v182 = vadd.f32 %v180, %v181
      %183 = vst [vmem:[%s179] sm:$0xff] %v182
    $region25: #{tpu_custom_call.1} parent=1 // pred_fallthru
      _
    %p184 = scmp.lt.s32.totalorder %s160, 2048
    // Predicated region
    $region26: #{tpu_custom_call.1} parent=1 // pred_check
      %p185 = pneg %p184
    $region27: #{tpu_custom_call.1} parent=1 // pred_check_branch
      %187 = sbr.rel (%p185) target = $region29
    $region28: #{tpu_custom_call.1} parent=1 // pred_region
      %v188 = vlaneseq
      %v189 = vshrl.u32 %v188, 7
      %v190 = vadd.s32 %v189, 8
      %v191 = vmul.u32 %v189, 128
      %v192 = vmul.u32 %v190, 128
      %v193 = vlaneseq
      %v194 = vand.u32 %v193, 127
      %v195 = vadd.s32 %v191, %v194
      %v196 = vadd.s32 %v192, %v194
      %v197 = vstv %s160
      %vm198 = vcmp.lt.s32.totalorder %v195, %v197
      %vm199 = vcmp.lt.s32.totalorder %v196, %v197
      %v200 = vsel %vm198, %v116, 0.0
      %v201 = vsel %vm199, %v117, 0.0
      %v202 = vsel %vm198, %v156, 0.0
      %v203 = vsel %vm199, %v157, 0.0
      %v204 = vsel %vm198, %v154, 0.0
      %v205 = vsel %vm199, %v155, 0.0
      %v206 = vsel %vm198, %v74, 0.0
      %v207 = vsel %vm199, %v75, 0.0
      %v208 = vld [vmem:[#allocation7] sm:$0xff]
      %v209 = vadd.f32 %v200, %v201
      %v210 = vadd.f32 %v208, %v209
      %211 = vst [vmem:[#allocation7] sm:$0xff] %v210
      %s212 = scalar_lea.vmem [#allocation7], 8
      %v213 = vld [vmem:[%s212] sm:$0xff]
      %v214 = vadd.f32 %v202, %v203
      %v215 = vadd.f32 %v213, %v214
      %216 = vst [vmem:[%s212] sm:$0xff] %v215
      %s217 = scalar_lea.vmem [#allocation7], 16
      %v218 = vld [vmem:[%s217] sm:$0xff]
      %v219 = vadd.f32 %v204, %v205
      %v220 = vadd.f32 %v218, %v219
      %221 = vst [vmem:[%s217] sm:$0xff] %v220
      %s222 = scalar_lea.vmem [#allocation7], 24
      %v223 = vld [vmem:[%s222] sm:$0xff]
      %v224 = vadd.f32 %v206, %v207
      %v225 = vadd.f32 %v223, %v224
      %226 = vst [vmem:[%s222] sm:$0xff] %v225
    $region29: #{tpu_custom_call.1} parent=1 // pred_fallthru
      _
    // Predicated region
    $region30: #{tpu_custom_call.1} parent=1 // pred_check
      _
    $region31: #{tpu_custom_call.1} parent=1 // pred_check_branch
      %228 = sbr.rel (0) target = $region33
    $region32: #{tpu_custom_call.1} parent=1 // pred_region
      %230 = vsyncadd [#allocation4], 0
      %s231 = sshll.u32 [#allocation7], 4
      %s232 = int_to_ptr.vmem [resolvable:$true] %s231
      %s233 = sshll.u32 %s2, 4
      %s234 = int_to_ptr.hbm [resolvable:$true] %s233
      %239 = dma.vmem_to_hbm [thread:$0]  %s232, 512, %s234, [#allocation4], 128, 128, 8
    $region33: #{tpu_custom_call.1} parent=1 // pred_fallthru
      _
    // Predicated region
    $region34: #{tpu_custom_call.1} parent=1 // pred_check
      _
    $region35: #{tpu_custom_call.1} parent=1 // pred_check_branch
      %241 = sbr.rel (0) target = $region37
    $region36: #{tpu_custom_call.1} parent=1 // pred_region
      %243 = dma.done [#allocation4], 512
    $region37: #{tpu_custom_call.1} parent=1 // pred_fallthru
      _
    %244 = vsyncpa [#allocation3], 1
    %245 = vsyncpa [#allocation6], 1
    %246 = vsyncpa [#allocation4], 1

</llo_original>
